<compile_context>
chip_gen: v7x
topology: tpu7x:2x2x1
jax: 0.10.0
libtpu: 0.0.40
codegen_flags: <defaults>
</compile_context>

<pallas_src>
import functools

import jax
import jax.numpy as jnp
from jax.experimental import pallas as pl
from jax.experimental.pallas import tpu as pltpu


# ---------------------------------------------------------------------------
# Fused FFN kernel: one row-tile per grid step.
# ---------------------------------------------------------------------------
def _ffn_kernel(x_ref, w1_ref, b1_ref, u_ref, w2_ref, b2_ref, o_ref, *, p, training):
    x = x_ref[...]                                                     # (TM, D)

    # linear1 + ReLU (MXU matmul, f32 accumulate)
    h = jnp.dot(x, w1_ref[...], preferred_element_type=jnp.float32) + b1_ref[...]
    h = jnp.maximum(h, jnp.float32(0.0))                               # (TM, H)

    # Inverted dropout (matches torch.nn.Dropout(p) training semantics: zero with
    # prob p, scale survivors by 1/(1-p)). Mask uniforms are a regular tiled input,
    # so this is a single compare+select fused before the second matmul.
    if training and p > 0.0:
        if p >= 1.0:
            h = jnp.zeros_like(h)
        else:
            keep = u_ref[...] >= jnp.float32(p)
            h = jnp.where(keep, h * jnp.float32(1.0 / (1.0 - p)), jnp.float32(0.0))

    # linear2 (MXU matmul) + single lane-dense store
    out = jnp.dot(h, w2_ref[...], preferred_element_type=jnp.float32) + b2_ref[...]
    o_ref[...] = out.astype(o_ref.dtype)


# ---------------------------------------------------------------------------
# Wrapper: reshape (B, S, D) -> (M, D), tile over rows, call pallas_call.
# ---------------------------------------------------------------------------
def positionwise_feed_forward(x, w1, b1, w2, b2, dropout_uniforms,
                              *, p=0.1, training=True, tm=None):
    """x: (B, S, D) f32; w1: (D, H); b1: (H,); w2: (H, D); b2: (D,);
    dropout_uniforms: (B*S, H) f32 uniforms in [0, 1)."""
    B, S, D = x.shape
    H = w1.shape[1]
    M = B * S

    if tm is None:
        tm = M
        for t in (512, 256, 128, 64, 32, 16, 8):
            if M % t == 0:
                tm = t
                break
    assert M % tm == 0, f"row count {M} must be divisible by tile {tm}"

    x2 = x.reshape(M, D)
    b1_2d = b1.reshape(1, H)
    b2_2d = b2.reshape(1, D)

    kernel = functools.partial(_ffn_kernel, p=float(p), training=bool(training))

    out2 = pl.pallas_call(
        kernel,
        out_shape=jax.ShapeDtypeStruct((M, D), x.dtype),
        grid=(M // tm,),
        in_specs=[
            pl.BlockSpec((tm, D), lambda i: (i, 0)),   # x row tile
            pl.BlockSpec((D, H), lambda i: (0, 0)),    # W1 (resident)
            pl.BlockSpec((1, H), lambda i: (0, 0)),    # b1
            pl.BlockSpec((tm, H), lambda i: (i, 0)),   # dropout uniforms tile
            pl.BlockSpec((H, D), lambda i: (0, 0)),    # W2 (resident)
            pl.BlockSpec((1, D), lambda i: (0, 0)),    # b2
        ],
        out_specs=pl.BlockSpec((tm, D), lambda i: (i, 0)),
        compiler_params=pltpu.CompilerParams(dimension_semantics=("parallel",)),
    )(x2, w1, b1_2d, dropout_uniforms, w2, b2_2d)

    return out2.reshape(B, S, D)


# ---------------------------------------------------------------------------
# Pure-JAX reference (same math, same dropout mask) for a correctness check.
# ---------------------------------------------------------------------------
def _ffn_ref(x, w1, b1, w2, b2, u, *, p, training):
    B, S, D = x.shape
    h = jnp.maximum(x.reshape(B * S, D) @ w1 + b1, 0.0)
    if training and p > 0.0:
        h = jnp.where(u >= p, h / (1.0 - p), 0.0)
    return (h @ w2 + b2).reshape(B, S, D)


if __name__ == "__main__":
    # Small, deterministic setup consistent with the module's forward:
    # x (batch, seq, d_model); lane-dense dims (multiples of 128).
    B, S, d_model, hidden = 2, 8, 128, 256
    drop_prob = 0.1

    key = jax.random.PRNGKey(0)
    kx, k1, k2, k3, k4, ku = jax.random.split(key, 6)

    x = jax.random.normal(kx, (B, S, d_model), dtype=jnp.float32)
    # nn.Linear-style init (uniform in +-1/sqrt(fan_in)); exact torch RNG not required.
    w1 = jax.random.uniform(k1, (d_model, hidden), jnp.float32,
                            -1.0 / d_model**0.5, 1.0 / d_model**0.5)
    b1 = jax.random.uniform(k2, (hidden,), jnp.float32,
                            -1.0 / d_model**0.5, 1.0 / d_model**0.5)
    w2 = jax.random.uniform(k3, (hidden, d_model), jnp.float32,
                            -1.0 / hidden**0.5, 1.0 / hidden**0.5)
    b2 = jax.random.uniform(k4, (d_model,), jnp.float32,
                            -1.0 / hidden**0.5, 1.0 / hidden**0.5)

    # Host-side dropout uniforms (same distribution as torch dropout, not the same
    # RNG stream).  Shared between kernel and reference so results match exactly.
    u = jax.random.uniform(ku, (B * S, hidden), dtype=jnp.float32)

    out = positionwise_feed_forward(x, w1, b1, w2, b2, u,
                                    p=drop_prob, training=True, tm=8)
    out = jax.block_until_ready(out)

    ref = _ffn_ref(x, w1, b1, w2, b2, u, p=drop_prob, training=True)

    assert out.shape == (B, S, d_model)
    assert out.dtype == jnp.float32
    assert bool(jnp.all(jnp.isfinite(out)))
    assert bool(jnp.allclose(out, ref, rtol=1e-5, atol=1e-5))

    print("KERNEL_OK")
</pallas_src>

<mosaic_0001>
module attributes {stable_mosaic.version = 11 : i64} {
  func.func @_ffn_kernel(%arg0: i32, %arg1: memref<8x128xf32, #tpu.memory_space<vmem>>, %arg2: memref<128x256xf32, #tpu.memory_space<vmem>>, %arg3: memref<1x256xf32, #tpu.memory_space<vmem>>, %arg4: memref<8x256xf32, #tpu.memory_space<vmem>>, %arg5: memref<256x128xf32, #tpu.memory_space<vmem>>, %arg6: memref<1x128xf32, #tpu.memory_space<vmem>>, %arg7: memref<8x128xf32, #tpu.memory_space<vmem>>) attributes {dimension_semantics = [#tpu.dimension_semantics<parallel>], iteration_bounds = array<i64: 2>, scalar_prefetch = 0 : i64, scratch_operands = 0 : i64, tpu.core_type = #tpu.core_type<tc>, window_params = [{transform_indices = @transform_0, window_bounds = array<i64: 8, 128>}, {pipeline_mode = #tpu.pipeline_mode<synchronous>, transform_indices = @transform_1, window_bounds = array<i64: 128, 256>}, {pipeline_mode = #tpu.pipeline_mode<synchronous>, transform_indices = @transform_2, window_bounds = array<i64: 1, 256>}, {transform_indices = @transform_3, window_bounds = array<i64: 8, 256>}, {pipeline_mode = #tpu.pipeline_mode<synchronous>, transform_indices = @transform_4, window_bounds = array<i64: 256, 128>}, {pipeline_mode = #tpu.pipeline_mode<synchronous>, transform_indices = @transform_5, window_bounds = array<i64: 1, 128>}, {transform_indices = @transform_6, window_bounds = array<i64: 8, 128>}]} {
    %c0 = arith.constant 0 : index
    %c0_0 = arith.constant 0 : index
    %0 = vector.load %arg1[%c0, %c0_0] : memref<8x128xf32, #tpu.memory_space<vmem>>, vector<8x128xf32>
    %c0_1 = arith.constant 0 : index
    %c0_2 = arith.constant 0 : index
    %1 = vector.load %arg2[%c0_1, %c0_2] : memref<128x256xf32, #tpu.memory_space<vmem>>, vector<128x256xf32>
    %cst = arith.constant dense<0.000000e+00> : vector<8x256xf32>
    %2 = tpu.matmul %0, %1, %cst {dimension_numbers = #tpu.dot_dimension_numbers<[1], [0], [0], [1], [0, 0, 1, 1], [], []>} : vector<8x128xf32>, vector<128x256xf32>, vector<8x256xf32> -> vector<8x256xf32>
    %c0_3 = arith.constant 0 : index
    %c0_4 = arith.constant 0 : index
    %3 = vector.load %arg3[%c0_3, %c0_4] : memref<1x256xf32, #tpu.memory_space<vmem>>, vector<1x256xf32>
    %4 = vector.broadcast %3 : vector<1x256xf32> to vector<8x256xf32>
    %5 = arith.addf %2, %4 : vector<8x256xf32>
    %cst_5 = arith.constant 0.000000e+00 : f32
    %6 = vector.broadcast %cst_5 : f32 to vector<8x256xf32>
    %7 = arith.maximumf %5, %6 : vector<8x256xf32>
    %c0_6 = arith.constant 0 : index
    %c0_7 = arith.constant 0 : index
    %8 = vector.load %arg4[%c0_6, %c0_7] : memref<8x256xf32, #tpu.memory_space<vmem>>, vector<8x256xf32>
    %cst_8 = arith.constant 1.000000e-01 : f32
    %9 = vector.broadcast %cst_8 : f32 to vector<8x256xf32>
    %10 = arith.cmpf oge, %8, %9 : vector<8x256xf32>
    %cst_9 = arith.constant 1.11111116 : f32
    %11 = vector.broadcast %cst_9 : f32 to vector<8x256xf32>
    %12 = arith.mulf %7, %11 : vector<8x256xf32>
    %cst_10 = arith.constant 0.000000e+00 : f32
    %13 = vector.broadcast %cst_10 : f32 to vector<8x256xf32>
    %14 = arith.select %10, %12, %13 : vector<8x256xi1>, vector<8x256xf32>
    %c0_11 = arith.constant 0 : index
    %c0_12 = arith.constant 0 : index
    %15 = vector.load %arg5[%c0_11, %c0_12] : memref<256x128xf32, #tpu.memory_space<vmem>>, vector<256x128xf32>
    %cst_13 = arith.constant dense<0.000000e+00> : vector<8x128xf32>
    %16 = tpu.matmul %14, %15, %cst_13 {dimension_numbers = #tpu.dot_dimension_numbers<[1], [0], [0], [1], [0, 0, 1, 1], [], []>} : vector<8x256xf32>, vector<256x128xf32>, vector<8x128xf32> -> vector<8x128xf32>
    %c0_14 = arith.constant 0 : index
    %c0_15 = arith.constant 0 : index
    %17 = vector.load %arg6[%c0_14, %c0_15] : memref<1x128xf32, #tpu.memory_space<vmem>>, vector<1x128xf32>
    %18 = vector.broadcast %17 : vector<1x128xf32> to vector<8x128xf32>
    %19 = arith.addf %16, %18 : vector<8x128xf32>
    %c0_16 = arith.constant 0 : index
    %c0_17 = arith.constant 0 : index
    %20 = vector.load %arg7[%c0_16, %c0_17] : memref<8x128xf32, #tpu.memory_space<vmem>>, vector<8x128xf32>
    tpu.vector_store %arg7[%c0_16, %c0_17], %19 {strides = array<i32>} : memref<8x128xf32, #tpu.memory_space<vmem>>, vector<8x128xf32>,
    return
  }
  func.func @transform_0(%arg0: i32) -> (i32, i32) {
    %c0_i32 = arith.constant 0 : i32
    %c0_i32_0 = arith.constant 0 : i32
    return %arg0, %c0_i32 : i32, i32
  }
  func.func @transform_1(%arg0: i32) -> (i32, i32) {
    %c0_i32 = arith.constant 0 : i32
    %c0_i32_0 = arith.constant 0 : i32
    %c0_i32_1 = arith.constant 0 : i32
    return %c0_i32, %c0_i32_0 : i32, i32
  }
  func.func @transform_2(%arg0: i32) -> (i32, i32) {
    %c0_i32 = arith.constant 0 : i32
    %c0_i32_0 = arith.constant 0 : i32
    %c0_i32_1 = arith.constant 0 : i32
    return %c0_i32, %c0_i32_0 : i32, i32
  }
  func.func @transform_3(%arg0: i32) -> (i32, i32) {
    %c0_i32 = arith.constant 0 : i32
    %c0_i32_0 = arith.constant 0 : i32
    return %arg0, %c0_i32 : i32, i32
  }
  func.func @transform_4(%arg0: i32) -> (i32, i32) {
    %c0_i32 = arith.constant 0 : i32
    %c0_i32_0 = arith.constant 0 : i32
    %c0_i32_1 = arith.constant 0 : i32
    return %c0_i32, %c0_i32_0 : i32, i32
  }
  func.func @transform_5(%arg0: i32) -> (i32, i32) {
    %c0_i32 = arith.constant 0 : i32
    %c0_i32_0 = arith.constant 0 : i32
    %c0_i32_1 = arith.constant 0 : i32
    return %c0_i32, %c0_i32_0 : i32, i32
  }
  func.func @transform_6(%arg0: i32) -> (i32, i32) {
    %c0_i32 = arith.constant 0 : i32
    %c0_i32_0 = arith.constant 0 : i32
    return %arg0, %c0_i32 : i32, i32
  }
}

</mosaic_0001>

<llo_original>
// kernel: tpu_custom_call.1
$region0: #{tpu_custom_call.1}
  #allocation0 [shape = 'u32[]', space=smem, size = 0x4, offset = 0x4, fixed_abs, tag = 'smem constant byte address 0x4 - core index']
  #allocation1 [shape = 'u32[144,128]{1,0:T(1,128)}', space=vmem, size = 0x12000, scoped, tag = 'internal scratch']
  %s0 = inlined_call_operand.hbm [shape: f32[16,128], index: 0, kind: input, shape index: {}]
  %s1 = inlined_call_operand.hbm [shape: f32[128,256], index: 1, kind: input, shape index: {}]
  %s2 = inlined_call_operand.vmem [shape: f32[1,256], index: 2, kind: input, shape index: {}]
  %s3 = inlined_call_operand.hbm [shape: f32[16,256], index: 3, kind: input, shape index: {}]
  %s4 = inlined_call_operand.hbm [shape: f32[256,128], index: 4, kind: input, shape index: {}]
  %s5 = inlined_call_operand.vmem [shape: f32[1,128], index: 5, kind: input, shape index: {}]
  %s6 = inlined_call_operand.hbm [shape: f32[16,128], index: 6, kind: output, shape index: {}]
  %s7 = sld [smem:[#allocation0]]
  $region73: #{tpu_custom_call.1} parent=0
    _
  %s9 = ssub.s32 1, %s7
  %s10 = scalar_select 0, %s9, %s7
  $region1: #{tpu_custom_call.1} parent=0
    #allocation2 [shape = 'u8[8192]{0}', space=vmem, size = 0x2000, scoped, tag = 'input window, operand 0']
    #allocation3 [shape = 's32[2]{0}', space=sflag, size = 0x8, scoped, tag = 'scoped memory for tpu_custom_call.1']
    #allocation4 [shape = 's32[2]{0}', space=sflag, size = 0x8, scoped, tag = 'scoped memory for tpu_custom_call.1']
    #allocation5 [shape = 'u8[131072]{0}', space=vmem, size = 0x20000, scoped, tag = 'input window, operand 1, single buffered']
    #allocation6 [shape = 's32[1]{0}', space=sflag, size = 0x4, scoped, tag = 'scoped memory for tpu_custom_call.1']
    #allocation7 [shape = 'u8[16384]{0}', space=vmem, size = 0x4000, scoped, tag = 'input window, operand 3']
    #allocation8 [shape = 'u8[131072]{0}', space=vmem, size = 0x20000, scoped, tag = 'input window, operand 4, single buffered']
    #allocation9 [shape = 'u8[8192]{0}', space=vmem, size = 0x2000, scoped, tag = 'output window, operand 0']
    %11 = vsyncpa [#allocation3], 0
    %s12 = scalar_lea.sflag [#allocation3], 1
    %13 = vsyncpa %s12, 0
    %14 = vsyncpa [#allocation6], 0
    %15 = vsyncpa [#allocation4], 0
    %s16 = scalar_lea.sflag [#allocation4], 1
    %17 = vsyncpa %s16, 0
    loop: start=0, step=1, limit=4
    $region2: #{tpu_custom_call.1} parent=1 // loop_pre_header
      _
    $region3: #{tpu_custom_call.1} parent=1 // loop_header
      %s19 = sphi 0, %s23
      %p20 = scmp.ge.s32.totalorder %s19, 4
      %s29 = sphi 0, %s31
      %s32 = sphi 0, %s29
      %s33 = sphi 0, %s32
      %s49 = sphi 0, %s33
      %s53 = sphi 0, %s53
      %s55 = sphi 0, %s53
      %s56 = sphi 0, %s55
      %s70 = sphi 0, %s56
      %s74 = sphi 0, %s74
      %s76 = sphi 0, %s74
      %s77 = sphi 0, %s76
      %s91 = sphi 0, %s77
      %s97 = sphi 0, %s99
      %s100 = sphi 0, %s97
      %s101 = sphi 0, %s100
      %s117 = sphi 0, %s101
      %s121 = sphi 0, %s121
      %s123 = sphi 0, %s121
      %s124 = sphi 0, %s123
      %s138 = sphi 0, %s124
      %s142 = sphi 0, %s142
      %s144 = sphi 0, %s142
      %s145 = sphi 0, %s144
      %s159 = sphi 0, %s145
      %s165 = sphi 0, %s167
      %s168 = sphi 0, %s165
      %s169 = sphi 0, %s168
      %s185 = sphi 0, %s169
    $region4: #{tpu_custom_call.1} parent=1 // loop_header_branch
      %22 = sbr.rel (%p20) target = $region8
    $region5: #{tpu_custom_call.1} parent=1 // loop_body
      %s24 = ssub.s32 %s19, 1
      %s25 = ssub.s32 %s19, 2
      %s26 = sadd.s32 %s19, 1
      %s27 = ssub.s32 %s19, %s26
      %p28 = scmp.eq.s32.totalorder %s27, 0
      %s30 = sadd.s32 %s29, 1
      %s31 = scalar_select %p28, %s29, %s30
      %p34 = pneg %p28
      %p35 = scmp.eq.s32.totalorder %s19, 1
      %p36 = por %p34, %p35
      %p37 = scmp.ne.s32.totalorder %s29, %s32
      %p38 = scmp.eq.s32.totalorder %s19, 0
      %p39 = por %p37, %p38
      %p40 = scmp.ne.s32.totalorder %s29, %s32
      %p41 = scmp.eq.s32.totalorder %s24, 1
      %p42 = por %p40, %p41
      %p43 = scmp.ne.s32.totalorder %s32, %s33
      %p44 = scmp.eq.s32.totalorder %s24, 0
      %p45 = por %p43, %p44
      %p46 = scmp.ne.s32.totalorder %s32, %s33
      %p47 = scmp.eq.s32.totalorder %s25, 1
      %p48 = por %p46, %p47
      %p50 = scmp.ne.s32.totalorder %s33, %s49
      %p51 = scmp.eq.s32.totalorder %s25, 0
      %p52 = por %p50, %p51
      %s54 = sadd.s32 %s53, 1
      %p57 = scmp.eq.s32.totalorder %s19, 1
      %p58 = scmp.ne.s32.totalorder %s53, %s55
      %p59 = scmp.eq.s32.totalorder %s19, 0
      %p60 = por %p58, %p59
      %p61 = scmp.ne.s32.totalorder %s53, %s55
      %p62 = scmp.eq.s32.totalorder %s24, 1
      %p63 = por %p61, %p62
      %p64 = scmp.ne.s32.totalorder %s55, %s56
      %p65 = scmp.eq.s32.totalorder %s24, 0
      %p66 = por %p64, %p65
      %p67 = scmp.ne.s32.totalorder %s55, %s56
      %p68 = scmp.eq.s32.totalorder %s25, 1
      %p69 = por %p67, %p68
      %p71 = scmp.ne.s32.totalorder %s56, %s70
      %p72 = scmp.eq.s32.totalorder %s25, 0
      %p73 = por %p71, %p72
      %s75 = sadd.s32 %s74, 1
      %p78 = scmp.eq.s32.totalorder %s19, 1
      %p79 = scmp.ne.s32.totalorder %s74, %s76
      %p80 = scmp.eq.s32.totalorder %s19, 0
      %p81 = por %p79, %p80
      %p82 = scmp.ne.s32.totalorder %s74, %s76
      %p83 = scmp.eq.s32.totalorder %s24, 1
      %p84 = por %p82, %p83
      %p85 = scmp.ne.s32.totalorder %s76, %s77
      %p86 = scmp.eq.s32.totalorder %s24, 0
      %p87 = por %p85, %p86
      %p88 = scmp.ne.s32.totalorder %s76, %s77
      %p89 = scmp.eq.s32.totalorder %s25, 1
      %p90 = por %p88, %p89
      %p92 = scmp.ne.s32.totalorder %s77, %s91
      %p93 = scmp.eq.s32.totalorder %s25, 0
      %p94 = por %p92, %p93
      %s95 = ssub.s32 %s19, %s26
      %p96 = scmp.eq.s32.totalorder %s95, 0
      %s98 = sadd.s32 %s97, 1
      %s99 = scalar_select %p96, %s97, %s98
      %p102 = pneg %p96
      %p103 = scmp.eq.s32.totalorder %s19, 1
      %p104 = por %p102, %p103
      %p105 = scmp.ne.s32.totalorder %s97, %s100
      %p106 = scmp.eq.s32.totalorder %s19, 0
      %p107 = por %p105, %p106
      %p108 = scmp.ne.s32.totalorder %s97, %s100
      %p109 = scmp.eq.s32.totalorder %s24, 1
      %p110 = por %p108, %p109
      %p111 = scmp.ne.s32.totalorder %s100, %s101
      %p112 = scmp.eq.s32.totalorder %s24, 0
      %p113 = por %p111, %p112
      %p114 = scmp.ne.s32.totalorder %s100, %s101
      %p115 = scmp.eq.s32.totalorder %s25, 1
      %p116 = por %p114, %p115
      %p118 = scmp.ne.s32.totalorder %s101, %s117
      %p119 = scmp.eq.s32.totalorder %s25, 0
      %p120 = por %p118, %p119
      %s122 = sadd.s32 %s121, 1
      %p125 = scmp.eq.s32.totalorder %s19, 1
      %p126 = scmp.ne.s32.totalorder %s121, %s123
      %p127 = scmp.eq.s32.totalorder %s19, 0
      %p128 = por %p126, %p127
      %p129 = scmp.ne.s32.totalorder %s121, %s123
      %p130 = scmp.eq.s32.totalorder %s24, 1
      %p131 = por %p129, %p130
      %p132 = scmp.ne.s32.totalorder %s123, %s124
      %p133 = scmp.eq.s32.totalorder %s24, 0
      %p134 = por %p132, %p133
      %p135 = scmp.ne.s32.totalorder %s123, %s124
      %p136 = scmp.eq.s32.totalorder %s25, 1
      %p137 = por %p135, %p136
      %p139 = scmp.ne.s32.totalorder %s124, %s138
      %p140 = scmp.eq.s32.totalorder %s25, 0
      %p141 = por %p139, %p140
      %s143 = sadd.s32 %s142, 1
      %p146 = scmp.eq.s32.totalorder %s19, 1
      %p147 = scmp.ne.s32.totalorder %s142, %s144
      %p148 = scmp.eq.s32.totalorder %s19, 0
      %p149 = por %p147, %p148
      %p150 = scmp.ne.s32.totalorder %s142, %s144
      %p151 = scmp.eq.s32.totalorder %s24, 1
      %p152 = por %p150, %p151
      %p153 = scmp.ne.s32.totalorder %s144, %s145
      %p154 = scmp.eq.s32.totalorder %s24, 0
      %p155 = por %p153, %p154
      %p156 = scmp.ne.s32.totalorder %s144, %s145
      %p157 = scmp.eq.s32.totalorder %s25, 1
      %p158 = por %p156, %p157
      %p160 = scmp.ne.s32.totalorder %s145, %s159
      %p161 = scmp.eq.s32.totalorder %s25, 0
      %p162 = por %p160, %p161
      %s163 = ssub.s32 %s19, %s26
      %p164 = scmp.eq.s32.totalorder %s163, 0
      %s166 = sadd.s32 %s165, 1
      %s167 = scalar_select %p164, %s165, %s166
      %p170 = pneg %p164
      %p171 = scmp.eq.s32.totalorder %s19, 1
      %p172 = por %p170, %p171
      %p173 = scmp.ne.s32.totalorder %s165, %s168
      %p174 = scmp.eq.s32.totalorder %s19, 0
      %p175 = por %p173, %p174
      %p176 = scmp.ne.s32.totalorder %s165, %s168
      %p177 = scmp.eq.s32.totalorder %s24, 1
      %p178 = por %p176, %p177
      %p179 = scmp.ne.s32.totalorder %s168, %s169
      %p180 = scmp.eq.s32.totalorder %s24, 0
      %p181 = por %p179, %p180
      %p182 = scmp.ne.s32.totalorder %s168, %s169
      %p183 = scmp.eq.s32.totalorder %s25, 1
      %p184 = por %p182, %p183
      %p186 = scmp.ne.s32.totalorder %s169, %s185
      %p187 = scmp.eq.s32.totalorder %s25, 0
      %p188 = por %p186, %p187
      %p189 = scmp.le.s32.totalorder 1, %s19
      %p190 = scmp.lt.s32.totalorder %s19, 3
      %p191 = pnand %p189, %p190
      %p192 = pneg %p191
      // Predicated region
      $region9: #{tpu_custom_call.1} parent=5 // pred_check
        _
      $region10: #{tpu_custom_call.1} parent=5 // pred_check_branch
        %194 = sbr.rel (%p191) target = $region12
      $region11: #{tpu_custom_call.1} parent=5 // pred_region
        %s195 = ssub.s32 %s19, 1
        // Predicated region
        $region13: #{tpu_custom_call.1} parent=11 // pred_check
          %p196 = pneg %p66
        $region14: #{tpu_custom_call.1} parent=11 // pred_check_branch
          %198 = sbr.rel (%p196) target = $region16
        $region15: #{tpu_custom_call.1} parent=11 // pred_region
          %s200 = ssub.s32 4096, 4096
          %201 = vsyncadd [#allocation6], %s200
          %s202 = sshll.u32 [#allocation5], 4
          %s203 = int_to_ptr.vmem [resolvable:$true] %s202
          %208 = dma.hbm_to_vmem [thread:$0]  %s1, 4096, %s203, [#allocation6], 256, 256, 16
        $region16: #{tpu_custom_call.1} parent=11 // pred_fallthru
          _
        // Predicated region
        $region17: #{tpu_custom_call.1} parent=11 // pred_check
          %p209 = pneg %p87
        $region18: #{tpu_custom_call.1} parent=11 // pred_check_branch
          %211 = sbr.rel (%p209) target = $region20
        $region19: #{tpu_custom_call.1} parent=11 // pred_region
          _
        $region20: #{tpu_custom_call.1} parent=11 // pred_fallthru
          _
        // Predicated region
        $region21: #{tpu_custom_call.1} parent=11 // pred_check
          %p212 = pneg %p134
        $region22: #{tpu_custom_call.1} parent=11 // pred_check_branch
          %214 = sbr.rel (%p212) target = $region24
        $region23: #{tpu_custom_call.1} parent=11 // pred_region
          %s216 = ssub.s32 4096, 4096
          %217 = vsyncadd [#allocation6], %s216
          %s218 = sshll.u32 [#allocation8], 4
          %s219 = int_to_ptr.vmem [resolvable:$true] %s218
          %224 = dma.hbm_to_vmem [thread:$0]  %s4, 4096, %s219, [#allocation6], 128, 128, 8
        $region24: #{tpu_custom_call.1} parent=11 // pred_fallthru
          _
        // Predicated region
        $region25: #{tpu_custom_call.1} parent=11 // pred_check
          %p225 = pneg %p155
        $region26: #{tpu_custom_call.1} parent=11 // pred_check_branch
          %227 = sbr.rel (%p225) target = $region28
        $region27: #{tpu_custom_call.1} parent=11 // pred_region
          _
        $region28: #{tpu_custom_call.1} parent=11 // pred_fallthru
          _
      $region12: #{tpu_custom_call.1} parent=5 // pred_fallthru
        _
      %p228 = scmp.lt.s32.totalorder %s19, 2
      // Predicated region
      $region29: #{tpu_custom_call.1} parent=5 // pred_check
        %p229 = pneg %p228
      $region30: #{tpu_custom_call.1} parent=5 // pred_check_branch
        %231 = sbr.rel (%p229) target = $region32
      $region31: #{tpu_custom_call.1} parent=5 // pred_region
        // Predicated region
        $region33: #{tpu_custom_call.1} parent=31 // pred_check
          %p232 = pneg %p39
        $region34: #{tpu_custom_call.1} parent=31 // pred_check_branch
          %234 = sbr.rel (%p232) target = $region36
        $region35: #{tpu_custom_call.1} parent=31 // pred_region
          %s235 = sand.u32 %s19, 1
          %s236 = scalar_lea.sflag [#allocation3], %s235
          %s237 = sand.u32 %s29, 1
          %s238 = smul.addr %s237, 8
          %s239 = scalar_lea.vmem [#allocation2], %s238
          %s241 = ssub.s32 128, 128
          %242 = vsyncadd %s236, %s241
          %s243 = smul.addr %s19, 128
          %s244 = scalar_lea.hbm %s0, %s243
          %s246 = sshll.u32 %s239, 4
          %s247 = int_to_ptr.vmem [resolvable:$true] %s246
          %249 = dma.hbm_to_vmem [thread:$0]  %s244, 128, %s247, %s236
        $region36: #{tpu_custom_call.1} parent=31 // pred_fallthru
          _
        // Predicated region
        $region37: #{tpu_custom_call.1} parent=31 // pred_check
          %p250 = pneg %p107
        $region38: #{tpu_custom_call.1} parent=31 // pred_check_branch
          %252 = sbr.rel (%p250) target = $region40
        $region39: #{tpu_custom_call.1} parent=31 // pred_region
          %s253 = sand.u32 %s19, 1
          %s254 = scalar_lea.sflag [#allocation3], %s253
          %s255 = sand.u32 %s97, 1
          %s256 = smul.addr %s255, 16
          %s257 = scalar_lea.vmem [#allocation7], %s256
          %s259 = ssub.s32 256, 256
          %260 = vsyncadd %s254, %s259
          %s261 = smul.addr %s19, 2
          %s262 = smul.addr %s261, 128
          %s263 = scalar_lea.hbm %s3, %s262
          %s265 = sshll.u32 %s257, 4
          %s266 = int_to_ptr.vmem [resolvable:$true] %s265
          %268 = dma.hbm_to_vmem [thread:$0]  %s263, 256, %s266, %s254
        $region40: #{tpu_custom_call.1} parent=31 // pred_fallthru
          _
      $region32: #{tpu_custom_call.1} parent=5 // pred_fallthru
        _
      %p269 = scmp.le.s32.totalorder 1, %s19
      %p270 = scmp.lt.s32.totalorder %s19, 3
      %p271 = pnand %p269, %p270
      %p272 = pneg %p271
      // Predicated region
      $region41: #{tpu_custom_call.1} parent=5 // pred_check
        _
      $region42: #{tpu_custom_call.1} parent=5 // pred_check_branch
        %274 = sbr.rel (%p271) target = $region44
      $region43: #{tpu_custom_call.1} parent=5 // pred_region
        %s275 = ssub.s32 %s19, 1
        %s276 = sand.u32 %s24, 1
        %s277 = scalar_lea.sflag [#allocation3], %s276
        %s278 = sand.u32 %s32, 1
        %s279 = smul.addr %s278, 8
        %s280 = scalar_lea.vmem [#allocation2], %s279
        // Predicated region
        $region45: #{tpu_custom_call.1} parent=43 // pred_check
          %p281 = pneg %p45
        $region46: #{tpu_custom_call.1} parent=43 // pred_check_branch
          %283 = sbr.rel (%p281) target = $region48
        $region47: #{tpu_custom_call.1} parent=43 // pred_region
          %284 = dma.done %s277, 128
        $region48: #{tpu_custom_call.1} parent=43 // pred_fallthru
          _
        // Predicated region
        $region49: #{tpu_custom_call.1} parent=43 // pred_check
          %p285 = pneg %p66
        $region50: #{tpu_custom_call.1} parent=43 // pred_check_branch
          %287 = sbr.rel (%p285) target = $region52
        $region51: #{tpu_custom_call.1} parent=43 // pred_region
          %288 = dma.done [#allocation6], 4096
        $region52: #{tpu_custom_call.1} parent=43 // pred_fallthru
          _
        %s289 = sand.u32 %s24, 1
        %s290 = scalar_lea.sflag [#allocation3], %s289
        %s291 = sand.u32 %s100, 1
        %s292 = smul.addr %s291, 16
        %s293 = scalar_lea.vmem [#allocation7], %s292
        // Predicated region
        $region53: #{tpu_custom_call.1} parent=43 // pred_check
          %p294 = pneg %p113
        $region54: #{tpu_custom_call.1} parent=43 // pred_check_branch
          %296 = sbr.rel (%p294) target = $region56
        $region55: #{tpu_custom_call.1} parent=43 // pred_region
          %297 = dma.done %s290, 256
        $region56: #{tpu_custom_call.1} parent=43 // pred_fallthru
          _
        // Predicated region
        $region57: #{tpu_custom_call.1} parent=43 // pred_check
          %p298 = pneg %p134
        $region58: #{tpu_custom_call.1} parent=43 // pred_check_branch
          %300 = sbr.rel (%p298) target = $region60
        $region59: #{tpu_custom_call.1} parent=43 // pred_region
          %301 = dma.done [#allocation6], 4096
        $region60: #{tpu_custom_call.1} parent=43 // pred_fallthru
          _
        %s302 = sand.u32 %s24, 1
        %s303 = scalar_lea.sflag [#allocation3], %s302
        %s304 = sand.u32 %s32, 1
        %s305 = smul.addr %s304, 8
        %s306 = scalar_lea.vmem [#allocation2], %s305
        %p307 = pneg %p45
        %p308 = pneg %p42
        %p309 = pneg %p66
        %p310 = pneg %p63
        %p311 = pneg %p87
        %p312 = pneg %p84
        %s313 = sand.u32 %s24, 1
        %s314 = scalar_lea.sflag [#allocation3], %s313
        %s315 = sand.u32 %s100, 1
        %s316 = smul.addr %s315, 16
        %s317 = scalar_lea.vmem [#allocation7], %s316
        %p318 = pneg %p113
        %p319 = pneg %p110
        %p320 = pneg %p134
        %p321 = pneg %p131
        %p322 = pneg %p155
        %p323 = pneg %p152
        %p324 = pneg %p181
        %p325 = pneg %p178
        %s326 = sand.u32 %s168, 1
        %s327 = scalar_lea.sflag [#allocation4], %s326
        %s328 = sand.u32 %s168, 1
        %s329 = smul.addr %s328, 8
        %s330 = scalar_lea.vmem [#allocation9], %s329
        %v331 = vld [vmem:[%s280] sm:$0xff]
        %v332 = vld [vmem:[#allocation5] sm:$0xff]
        %v333 = vld [vmem:[#allocation5 + $0x8] sm:$0xff]
        %v334 = vld [vmem:[#allocation5 + $0x10] sm:$0xff]
        %v335 = vld [vmem:[#allocation5 + $0x18] sm:$0xff]
        %v336 = vld [vmem:[#allocation5 + $0x20] sm:$0xff]
        %v337 = vld [vmem:[#allocation5 + $0x28] sm:$0xff]
        %v338 = vld [vmem:[#allocation5 + $0x30] sm:$0xff]
        %v339 = vld [vmem:[#allocation5 + $0x38] sm:$0xff]
        %v340 = vld [vmem:[#allocation5 + $0x40] sm:$0xff]
        %v341 = vld [vmem:[#allocation5 + $0x48] sm:$0xff]
        %v342 = vld [vmem:[#allocation5 + $0x50] sm:$0xff]
        %v343 = vld [vmem:[#allocation5 + $0x58] sm:$0xff]
        %v344 = vld [vmem:[#allocation5 + $0x60] sm:$0xff]
        %v345 = vld [vmem:[#allocation5 + $0x68] sm:$0xff]
        %v346 = vld [vmem:[#allocation5 + $0x70] sm:$0xff]
        %v347 = vld [vmem:[#allocation5 + $0x78] sm:$0xff]
        %v348 = vld [vmem:[#allocation5 + $0x80] sm:$0xff]
        %v349 = vld [vmem:[#allocation5 + $0x88] sm:$0xff]
        %v350 = vld [vmem:[#allocation5 + $0x90] sm:$0xff]
        %v351 = vld [vmem:[#allocation5 + $0x98] sm:$0xff]
        %v352 = vld [vmem:[#allocation5 + $0xa0] sm:$0xff]
        %v353 = vld [vmem:[#allocation5 + $0xa8] sm:$0xff]
        %v354 = vld [vmem:[#allocation5 + $0xb0] sm:$0xff]
        %v355 = vld [vmem:[#allocation5 + $0xb8] sm:$0xff]
        %v356 = vld [vmem:[#allocation5 + $0xc0] sm:$0xff]
        %v357 = vld [vmem:[#allocation5 + $0xc8] sm:$0xff]
        %v358 = vld [vmem:[#allocation5 + $0xd0] sm:$0xff]
        %v359 = vld [vmem:[#allocation5 + $0xd8] sm:$0xff]
        %v360 = vld [vmem:[#allocation5 + $0xe0] sm:$0xff]
        %v361 = vld [vmem:[#allocation5 + $0xe8] sm:$0xff]
        %v362 = vld [vmem:[#allocation5 + $0xf0] sm:$0xff]
        %v363 = vld [vmem:[#allocation5 + $0xf8] sm:$0xff]
        %v364 = vld [vmem:[%s2] sm:$0x3]
        %v366 = vlaneseq
        %v367 = vshrl.u32 %v366, 7
        %v368 = vsub.s32 0, %v367
        %v369 = vrot.slane %v364, %v368
        %v370 = vlaneseq
        %v371 = vshrl.u32 %v370, 7
        %v372 = vsub.s32 1, %v371
        %v373 = vrot.slane %v364, %v372
        %376 = vmatprep.subr.mxu0 %v333
        %377 = vmatpush1.msra.mxu0 %v332
        %378 = vmatprep.subr.mxu0 %v335
        %379 = vmatpush1.msra.mxu0 %v334
        %380 = vmatprep.subr.mxu0 %v337
        %381 = vmatpush1.msra.mxu0 %v336
        %382 = vmatprep.subr.mxu0 %v339
        %383 = vmatpush1.msra.mxu0 %v338
        %384 = vmatprep.subr.mxu0 %v341
        %385 = vmatpush1.msra.mxu0 %v340
        %386 = vmatprep.subr.mxu0 %v343
        %387 = vmatpush1.msra.mxu0 %v342
        %388 = vmatprep.subr.mxu0 %v345
        %389 = vmatpush1.msra.mxu0 %v344
        %390 = vmatprep.subr.mxu0 %v347
        %391 = vmatpush1.msra.mxu0 %v346
        %392 = vmatprep.subr.mxu0 %v349
        %393 = vmatpush1.msra.mxu0 %v348
        %394 = vmatprep.subr.mxu0 %v351
        %395 = vmatpush1.msra.mxu0 %v350
        %396 = vmatprep.subr.mxu0 %v353
        %397 = vmatpush1.msra.mxu0 %v352
        %398 = vmatprep.subr.mxu0 %v355
        %399 = vmatpush1.msra.mxu0 %v354
        %400 = vmatprep.subr.mxu0 %v357
        %401 = vmatpush1.msra.mxu0 %v356
        %402 = vmatprep.subr.mxu0 %v359
        %403 = vmatpush1.msra.mxu0 %v358
        %404 = vmatprep.subr.mxu0 %v361
        %405 = vmatpush1.msra.mxu0 %v360
        %406 = vmatprep.subr.mxu0 %v363
        %407 = vmatpush1.msra.mxu0 %v362
        %408 = vmatprep.subr.mxu0 0.0
        %409 = vmatpush1.msra.mxu0 0.0
        %410 = vmatprep.subr.mxu0 0.0
        %411 = vmatpush1.msra.mxu0 0.0
        %412 = vmatprep.subr.mxu0 0.0
        %413 = vmatpush1.msra.mxu0 0.0
        %414 = vmatprep.subr.mxu0 0.0
        %415 = vmatpush1.msra.mxu0 0.0
        %416 = vmatprep.subr.mxu0 0.0
        %417 = vmatpush1.msra.mxu0 0.0
        %418 = vmatprep.subr.mxu0 0.0
        %419 = vmatpush1.msra.mxu0 0.0
        %420 = vmatprep.subr.mxu0 0.0
        %421 = vmatpush1.msra.mxu0 0.0
        %422 = vmatprep.subr.mxu0 0.0
        %423 = vmatpush1.msra.mxu0 0.0
        %424 = vmatprep.subr.mxu0 0.0
        %425 = vmatpush1.msra.mxu0 0.0
        %426 = vmatprep.subr.mxu0 0.0
        %427 = vmatpush1.msra.mxu0 0.0
        %428 = vmatprep.subr.mxu0 0.0
        %429 = vmatpush1.msra.mxu0 0.0
        %430 = vmatprep.subr.mxu0 0.0
        %431 = vmatpush1.msra.mxu0 0.0
        %432 = vmatprep.subr.mxu0 0.0
        %433 = vmatpush1.msra.mxu0 0.0
        %434 = vmatprep.subr.mxu0 0.0
        %435 = vmatpush1.msra.mxu0 0.0
        %436 = vmatprep.subr.mxu0 0.0
        %437 = vmatpush1.msra.mxu0 0.0
        %438 = vmatprep.subr.mxu0 0.0
        %439 = vmatpush1.msra.mxu0 0.0
        %440 = vmatprep.mubr.f32.mxu0 0.0
        %441 = vmatmul.mubr.f32.gmra.mrb[0].mxu0 %v331
        %v442 = vpop.f32.mrb[0].mxu0
        %v443 = vadd.f32 %v369, %v442
        %v444 = vpop.f32.mrb[0].mxu0
        %v445 = vadd.f32 %v373, %v444
        %446 = vdwg.mxu0
        %v447 = vmax.f32 %v443, 0.0
        %v448 = vmax.f32 %v445, 0.0
        %v449 = vld [vmem:[%s293] sm:$0xff]
        %v450 = vld [vmem:[%s293 + $0x8] sm:$0xff]
        %vm451 = vcmp.ge.f32.partialorder %v449, 0.1
        %vm452 = vcmp.ge.f32.partialorder %v450, 0.1
        %v453 = vmul.f32 %v447, 1.1111112
        %v454 = vmul.f32 %v448, 1.1111112
        %v455 = vsel %vm451, %v453, 0.0
        %v456 = vsel %vm452, %v454, 0.0
        %v457 = vld [vmem:[#allocation8] sm:$0xff]
        %v458 = vld [vmem:[#allocation8 + $0x8] sm:$0xff]
        %v459 = vld [vmem:[#allocation8 + $0x10] sm:$0xff]
        %v460 = vld [vmem:[#allocation8 + $0x18] sm:$0xff]
        %v461 = vld [vmem:[#allocation8 + $0x20] sm:$0xff]
        %v462 = vld [vmem:[#allocation8 + $0x28] sm:$0xff]
        %v463 = vld [vmem:[#allocation8 + $0x30] sm:$0xff]
        %v464 = vld [vmem:[#allocation8 + $0x38] sm:$0xff]
        %v465 = vld [vmem:[#allocation8 + $0x40] sm:$0xff]
        %v466 = vld [vmem:[#allocation8 + $0x48] sm:$0xff]
        %v467 = vld [vmem:[#allocation8 + $0x50] sm:$0xff]
        %v468 = vld [vmem:[#allocation8 + $0x58] sm:$0xff]
        %v469 = vld [vmem:[#allocation8 + $0x60] sm:$0xff]
        %v470 = vld [vmem:[#allocation8 + $0x68] sm:$0xff]
        %v471 = vld [vmem:[#allocation8 + $0x70] sm:$0xff]
        %v472 = vld [vmem:[#allocation8 + $0x78] sm:$0xff]
        %v473 = vld [vmem:[#allocation8 + $0x80] sm:$0xff]
        %v474 = vld [vmem:[#allocation8 + $0x88] sm:$0xff]
        %v475 = vld [vmem:[#allocation8 + $0x90] sm:$0xff]
        %v476 = vld [vmem:[#allocation8 + $0x98] sm:$0xff]
        %v477 = vld [vmem:[#allocation8 + $0xa0] sm:$0xff]
        %v478 = vld [vmem:[#allocation8 + $0xa8] sm:$0xff]
        %v479 = vld [vmem:[#allocation8 + $0xb0] sm:$0xff]
        %v480 = vld [vmem:[#allocation8 + $0xb8] sm:$0xff]
        %v481 = vld [vmem:[#allocation8 + $0xc0] sm:$0xff]
        %v482 = vld [vmem:[#allocation8 + $0xc8] sm:$0xff]
        %v483 = vld [vmem:[#allocation8 + $0xd0] sm:$0xff]
        %v484 = vld [vmem:[#allocation8 + $0xd8] sm:$0xff]
        %v485 = vld [vmem:[#allocation8 + $0xe0] sm:$0xff]
        %v486 = vld [vmem:[#allocation8 + $0xe8] sm:$0xff]
        %v487 = vld [vmem:[#allocation8 + $0xf0] sm:$0xff]
        %v488 = vld [vmem:[#allocation8 + $0xf8] sm:$0xff]
        %v489 = vld [vmem:[%s5] sm:$0x1]
        %v491 = vlaneseq
        %v492 = vshrl.u32 %v491, 7
        %v493 = vsub.s32 0, %v492
        %v494 = vrot.slane %v489, %v493
        %496 = vmatprep.subr.mxu0 0.0
        %497 = vmatpush1.msra.mxu0 %v457
        %498 = vmatprep.subr.mxu0 0.0
        %499 = vmatpush1.msra.mxu0 %v458
        %500 = vmatprep.subr.mxu0 0.0
        %501 = vmatpush1.msra.mxu0 %v459
        %502 = vmatprep.subr.mxu0 0.0
        %503 = vmatpush1.msra.mxu0 %v460
        %504 = vmatprep.subr.mxu0 0.0
        %505 = vmatpush1.msra.mxu0 %v461
        %506 = vmatprep.subr.mxu0 0.0
        %507 = vmatpush1.msra.mxu0 %v462
        %508 = vmatprep.subr.mxu0 0.0
        %509 = vmatpush1.msra.mxu0 %v463
        %510 = vmatprep.subr.mxu0 0.0
        %511 = vmatpush1.msra.mxu0 %v464
        %512 = vmatprep.subr.mxu0 0.0
        %513 = vmatpush1.msra.mxu0 %v465
        %514 = vmatprep.subr.mxu0 0.0
        %515 = vmatpush1.msra.mxu0 %v466
        %516 = vmatprep.subr.mxu0 0.0
        %517 = vmatpush1.msra.mxu0 %v467
        %518 = vmatprep.subr.mxu0 0.0
        %519 = vmatpush1.msra.mxu0 %v468
        %520 = vmatprep.subr.mxu0 0.0
        %521 = vmatpush1.msra.mxu0 %v469
        %522 = vmatprep.subr.mxu0 0.0
        %523 = vmatpush1.msra.mxu0 %v470
        %524 = vmatprep.subr.mxu0 0.0
        %525 = vmatpush1.msra.mxu0 %v471
        %526 = vmatprep.subr.mxu0 0.0
        %527 = vmatpush1.msra.mxu0 %v472
        %528 = vmatprep.subr.mxu0 0.0
        %529 = vmatpush1.msra.mxu0 %v473
        %530 = vmatprep.subr.mxu0 0.0
        %531 = vmatpush1.msra.mxu0 %v474
        %532 = vmatprep.subr.mxu0 0.0
        %533 = vmatpush1.msra.mxu0 %v475
        %534 = vmatprep.subr.mxu0 0.0
        %535 = vmatpush1.msra.mxu0 %v476
        %536 = vmatprep.subr.mxu0 0.0
        %537 = vmatpush1.msra.mxu0 %v477
        %538 = vmatprep.subr.mxu0 0.0
        %539 = vmatpush1.msra.mxu0 %v478
        %540 = vmatprep.subr.mxu0 0.0
        %541 = vmatpush1.msra.mxu0 %v479
        %542 = vmatprep.subr.mxu0 0.0
        %543 = vmatpush1.msra.mxu0 %v480
        %544 = vmatprep.subr.mxu0 0.0
        %545 = vmatpush1.msra.mxu0 %v481
        %546 = vmatprep.subr.mxu0 0.0
        %547 = vmatpush1.msra.mxu0 %v482
        %548 = vmatprep.subr.mxu0 0.0
        %549 = vmatpush1.msra.mxu0 %v483
        %550 = vmatprep.subr.mxu0 0.0
        %551 = vmatpush1.msra.mxu0 %v484
        %552 = vmatprep.subr.mxu0 0.0
        %553 = vmatpush1.msra.mxu0 %v485
        %554 = vmatprep.subr.mxu0 0.0
        %555 = vmatpush1.msra.mxu0 %v486
        %556 = vmatprep.subr.mxu0 0.0
        %557 = vmatpush1.msra.mxu0 %v487
        %558 = vmatprep.subr.mxu0 0.0
        %559 = vmatpush1.msra.mxu0 %v488
        %560 = vmatprep.mubr.f32.mxu0 %v456
        %561 = vmatmul.mubr.f32.gmra.mrb[0].mxu0 %v455
        %v562 = vpop.f32.mrb[0].mxu0
        %v563 = vadd.f32 %v494, %v562
        %v564 = vpop.f32.mrb[0].mxu0
        %565 = vdwg.mxu0
        %566 = vst [vmem:[%s330] sm:$0xff] %v563
        %s567 = sand.u32 %s168, 1
        %s568 = scalar_lea.sflag [#allocation4], %s567
        %s569 = sand.u32 %s168, 1
        %s570 = smul.addr %s569, 8
        %s571 = scalar_lea.vmem [#allocation9], %s570
        // Predicated region
        $region61: #{tpu_custom_call.1} parent=43 // pred_check
          %p572 = pneg %p178
        $region62: #{tpu_custom_call.1} parent=43 // pred_check_branch
          %574 = sbr.rel (%p572) target = $region64
        $region63: #{tpu_custom_call.1} parent=43 // pred_region
          %s576 = ssub.s32 128, 128
          %577 = vsyncadd %s568, %s576
          %s578 = smul.addr %s24, 128
          %s579 = scalar_lea.hbm %s6, %s578
          %s581 = sshll.u32 %s571, 4
          %s582 = int_to_ptr.vmem [resolvable:$true] %s581
          %584 = dma.vmem_to_hbm [thread:$0]  %s582, 128, %s579, %s568
        $region64: #{tpu_custom_call.1} parent=43 // pred_fallthru
          _
      $region44: #{tpu_custom_call.1} parent=5 // pred_fallthru
        _
      %p585 = scmp.le.s32.totalorder 2, %s19
      // Predicated region
      $region65: #{tpu_custom_call.1} parent=5 // pred_check
        %p586 = pneg %p585
      $region66: #{tpu_custom_call.1} parent=5 // pred_check_branch
        %588 = sbr.rel (%p586) target = $region68
      $region67: #{tpu_custom_call.1} parent=5 // pred_region
        %s589 = ssub.s32 %s19, 2
        // Predicated region
        $region69: #{tpu_custom_call.1} parent=67 // pred_check
          %p590 = pneg %p184
        $region70: #{tpu_custom_call.1} parent=67 // pred_check_branch
          %592 = sbr.rel (%p590) target = $region72
        $region71: #{tpu_custom_call.1} parent=67 // pred_region
          %s593 = sand.u32 %s169, 1
          %s594 = scalar_lea.sflag [#allocation4], %s593
          %s595 = sand.u32 %s169, 1
          %s596 = smul.addr %s595, 8
          %s597 = scalar_lea.vmem [#allocation9], %s596
          %598 = dma.done %s594, 128
        $region72: #{tpu_custom_call.1} parent=67 // pred_fallthru
          _
      $region68: #{tpu_custom_call.1} parent=5 // pred_fallthru
        _
    $region6: #{tpu_custom_call.1} parent=1 // loop_footer
      %s23 = sadd.s32 1, %s19
    $region7: #{tpu_custom_call.1} parent=1 // loop_footer_branch
      %18 = sbr.rel target = $region3
    $region8: #{tpu_custom_call.1} parent=1 // loop_exit
      _
    %599 = vsyncpa [#allocation3], 1
    %s600 = scalar_lea.sflag [#allocation3], 1
    %601 = vsyncpa %s600, 1
    %602 = vsyncpa [#allocation6], 1
    %603 = vsyncpa [#allocation4], 1
    %s604 = scalar_lea.sflag [#allocation4], 1
    %605 = vsyncpa %s604, 1

</llo_original>
